<compile_context>
chip_gen: v7x
topology: tpu7x:2x2x1
jax: 0.10.0
libtpu: 0.0.40
codegen_flags: <defaults>
</compile_context>

<pallas_src>
import jax
import jax.numpy as jnp
from jax.experimental import pallas as pl
from jax.experimental.pallas import tpu as pltpu

EPS = 1e-5  # nn.LayerNorm default


def _my_layernorm_kernel(x_ref, w_ref, o_ref):
    # x_ref: (TB, L, C)   w_ref: (1, C)   o_ref: (TB, L, C)
    C = x_ref.shape[-1]
    inv_c = 1.0 / C

    # Pass 1: per-(b, l) channel mean. f32 widening happens inside the
    # reduction expression; no named full-slab f32 copy is bound.
    mean_c = jnp.sum(x_ref[...].astype(jnp.float32), axis=-1, keepdims=True) * inv_c  # (TB, L, 1)

    # Pass 2: two-pass (centered) variance — avoids E[x^2]-E[x]^2 cancellation.
    var_c = (
        jnp.sum(jnp.square(x_ref[...].astype(jnp.float32) - mean_c), axis=-1, keepdims=True)
        * inv_c
    )                                                                                   # (TB, L, 1)
    rstd = jax.lax.rsqrt(var_c + EPS)                                                   # (TB, L, 1)

    # Pass 3: per-(batch, channel) sequence mean of x_norm. The LayerNorm bias
    # cancels exactly against the subtracted sequence mean, so it never appears.
    m = jnp.mean(
        (x_ref[...].astype(jnp.float32) - mean_c) * rstd, axis=1, keepdims=True
    )                                                                                   # (TB, 1, C)

    # Pass 4: single fused output sweep: out = w * (x_norm - mean_L(x_norm)).
    w = w_ref[...].astype(jnp.float32)[:, None, :]                                      # (1, 1, C)
    o_ref[...] = (
        ((x_ref[...].astype(jnp.float32) - mean_c) * rstd - m) * w
    ).astype(o_ref.dtype)


def _pick_tb(B, L, C):
    """Batch elements per grid step.

    Target ~4 MiB f32 slabs per step (amortizes the ~0.35 us/step pipeline
    overhead to <10% on v6e/v7x, still fine at v5e bandwidth). Aim for >= 2
    grid steps per TensorCore (v7x has 2 TCs sharding the "parallel" grid
    axis) so the BlockSpec double-buffer actually overlaps DMA with compute.
    No divisibility requirement: the wrapper uses grid = cdiv(B, tb).
    """
    slab_bytes = L * C * 4
    tb_vmem = max(1, (4 << 20) // slab_bytes)
    if B >= 4:
        tb_grid = B // 4          # >= 2 steps per v7x TensorCore
    elif B >= 2:
        tb_grid = B // 2          # at least 2 steps total
    else:
        tb_grid = 1
    return max(1, min(B, tb_vmem, tb_grid))


def my_layernorm(x, weight, bias):
    """x: [B, L, C]; weight, bias: [C] (LayerNorm affine parameters).

    `bias` is accepted for API parity with nn.LayerNorm but cancels exactly
    under the sequence-mean subtraction, so it is never DMA'd or added.
    """
    del bias  # exact cancellation: out = w * (x_norm - mean_L(x_norm))
    B, L, C = x.shape
    tb = _pick_tb(B, L, C)
    grid = (pl.cdiv(B, tb),)

    itemsize = jnp.dtype(x.dtype).itemsize
    cost = pl.CostEstimate(
        flops=9 * B * L * C,
        transcendentals=B * L,                         # one rsqrt per (b, l) row
        bytes_accessed=2 * B * L * C * itemsize + C * 4,
    )

    # VMEM budget: 2x double-buffered input + 2x double-buffered output blocks
    # + ~2 f32 slabs of fused-compute headroom + misc. Cap at 48 MiB so the
    # budget stays comfortably inside v7x's 64 MiB physical VMEM.
    io_slab = tb * L * C * itemsize
    f32_slab = tb * L * C * 4
    vmem_limit = int(min(48 << 20, max(16 << 20, 4 * io_slab + 2 * f32_slab + (1 << 20))))

    w2 = weight.reshape(1, C)
    return pl.pallas_call(
        _my_layernorm_kernel,
        out_shape=jax.ShapeDtypeStruct((B, L, C), x.dtype),
        grid_spec=pltpu.PrefetchScalarGridSpec(
            num_scalar_prefetch=0,
            grid=grid,
            in_specs=[
                pl.BlockSpec((tb, L, C), lambda i: (i, 0, 0)),
                pl.BlockSpec((1, C), lambda i: (0, 0)),
            ],
            out_specs=pl.BlockSpec((tb, L, C), lambda i: (i, 0, 0)),
        ),
        compiler_params=pltpu.CompilerParams(
            dimension_semantics=("parallel",),
            vmem_limit_bytes=vmem_limit,
        ),
        cost_estimate=cost,
    )(x, w2)


def _reference(x, weight, bias):
    """Pure-JAX reference matching the PyTorch module (keeps the affine bias)."""
    mean = jnp.mean(x, axis=-1, keepdims=True)
    var = jnp.mean((x - mean) ** 2, axis=-1, keepdims=True)
    x_hat = (x - mean) / jnp.sqrt(var + EPS) * weight + bias
    b = jnp.mean(x_hat, axis=1, keepdims=True)
    return x_hat - b


if __name__ == "__main__":
    key = jax.random.PRNGKey(0)
    kx, kw, kb = jax.random.split(key, 3)

    B, L, C = 2, 8, 32  # batch, seq_len, channels
    x = jax.random.normal(kx, (B, L, C), dtype=jnp.float32)
    weight = 1.0 + 0.1 * jax.random.normal(kw, (C,), dtype=jnp.float32)
    bias = 0.1 * jax.random.normal(kb, (C,), dtype=jnp.float32)

    out = my_layernorm(x, weight, bias)
    out = jax.block_until_ready(out)

    ref = _reference(x, weight, bias)
    assert out.shape == (B, L, C)
    assert jnp.allclose(out, ref, atol=2e-5, rtol=2e-5), "mismatch vs reference"
    print("KERNEL_OK")
</pallas_src>

<mosaic_0001>
module attributes {stable_mosaic.version = 11 : i64} {
  func.func @_my_layernorm_kernel(%arg0: i32, %arg1: memref<1x8x32xf32, #tpu.memory_space<vmem>>, %arg2: memref<1x32xf32, #tpu.memory_space<vmem>>, %arg3: memref<1x8x32xf32, #tpu.memory_space<vmem>>) attributes {dimension_semantics = [#tpu.dimension_semantics<parallel>], iteration_bounds = array<i64: 2>, scalar_prefetch = 0 : i64, scratch_operands = 0 : i64, tpu.core_type = #tpu.core_type<tc>, window_params = [{transform_indices = @transform_0, window_bounds = array<i64: 1, 8, 32>}, {pipeline_mode = #tpu.pipeline_mode<synchronous>, transform_indices = @transform_1, window_bounds = array<i64: 1, 32>}, {transform_indices = @transform_2, window_bounds = array<i64: 1, 8, 32>}]} {
    %c0 = arith.constant 0 : index
    %c0_0 = arith.constant 0 : index
    %c0_1 = arith.constant 0 : index
    %0 = vector.load %arg1[%c0, %c0_0, %c0_1] : memref<1x8x32xf32, #tpu.memory_space<vmem>>, vector<1x8x32xf32>
    %cst = arith.constant dense<0.000000e+00> : vector<1x8xf32>
    %1 = vector.multi_reduction <add>, %0, %cst [2] : vector<1x8x32xf32> to vector<1x8xf32>
    %2 = vector.shape_cast %1 : vector<1x8xf32> to vector<1x8x1xf32>
    %cst_2 = arith.constant 3.125000e-02 : f32
    %3 = vector.broadcast %cst_2 : f32 to vector<1x8x1xf32>
    %4 = arith.mulf %2, %3 : vector<1x8x1xf32>
    %c0_3 = arith.constant 0 : index
    %c0_4 = arith.constant 0 : index
    %c0_5 = arith.constant 0 : index
    %5 = vector.load %arg1[%c0_3, %c0_4, %c0_5] : memref<1x8x32xf32, #tpu.memory_space<vmem>>, vector<1x8x32xf32>
    %6 = vector.broadcast %4 : vector<1x8x1xf32> to vector<1x8x32xf32>
    %7 = arith.subf %5, %6 : vector<1x8x32xf32>
    %8 = arith.mulf %7, %7 : vector<1x8x32xf32>
    %cst_6 = arith.constant dense<0.000000e+00> : vector<1x8xf32>
    %9 = vector.multi_reduction <add>, %8, %cst_6 [2] : vector<1x8x32xf32> to vector<1x8xf32>
    %10 = vector.shape_cast %9 : vector<1x8xf32> to vector<1x8x1xf32>
    %cst_7 = arith.constant 3.125000e-02 : f32
    %11 = vector.broadcast %cst_7 : f32 to vector<1x8x1xf32>
    %12 = arith.mulf %10, %11 : vector<1x8x1xf32>
    %cst_8 = arith.constant 9.99999974E-6 : f32
    %13 = vector.broadcast %cst_8 : f32 to vector<1x8x1xf32>
    %14 = arith.addf %12, %13 : vector<1x8x1xf32>
    %15 = math.rsqrt %14 : vector<1x8x1xf32>
    %c0_9 = arith.constant 0 : index
    %c0_10 = arith.constant 0 : index
    %c0_11 = arith.constant 0 : index
    %16 = vector.load %arg1[%c0_9, %c0_10, %c0_11] : memref<1x8x32xf32, #tpu.memory_space<vmem>>, vector<1x8x32xf32>
    %17 = vector.broadcast %4 : vector<1x8x1xf32> to vector<1x8x32xf32>
    %18 = arith.subf %16, %17 : vector<1x8x32xf32>
    %19 = vector.broadcast %15 : vector<1x8x1xf32> to vector<1x8x32xf32>
    %20 = arith.mulf %18, %19 : vector<1x8x32xf32>
    %cst_12 = arith.constant dense<0.000000e+00> : vector<1x32xf32>
    %21 = vector.multi_reduction <add>, %20, %cst_12 [1] : vector<1x8x32xf32> to vector<1x32xf32>
    %22 = vector.shape_cast %21 : vector<1x32xf32> to vector<1x1x32xf32>
    %cst_13 = arith.constant 8.000000e+00 : f32
    %23 = vector.broadcast %cst_13 : f32 to vector<1x1x32xf32>
    %24 = arith.divf %22, %23 : vector<1x1x32xf32>
    %c0_14 = arith.constant 0 : index
    %c0_15 = arith.constant 0 : index
    %25 = vector.load %arg2[%c0_14, %c0_15] : memref<1x32xf32, #tpu.memory_space<vmem>>, vector<1x32xf32>
    %26 = vector.shape_cast %25 : vector<1x32xf32> to vector<1x1x32xf32>
    %c0_16 = arith.constant 0 : index
    %c0_17 = arith.constant 0 : index
    %c0_18 = arith.constant 0 : index
    %27 = vector.load %arg1[%c0_16, %c0_17, %c0_18] : memref<1x8x32xf32, #tpu.memory_space<vmem>>, vector<1x8x32xf32>
    %28 = vector.broadcast %4 : vector<1x8x1xf32> to vector<1x8x32xf32>
    %29 = arith.subf %27, %28 : vector<1x8x32xf32>
    %30 = vector.broadcast %15 : vector<1x8x1xf32> to vector<1x8x32xf32>
    %31 = arith.mulf %29, %30 : vector<1x8x32xf32>
    %32 = vector.broadcast %24 : vector<1x1x32xf32> to vector<1x8x32xf32>
    %33 = arith.subf %31, %32 : vector<1x8x32xf32>
    %34 = vector.broadcast %26 : vector<1x1x32xf32> to vector<1x8x32xf32>
    %35 = arith.mulf %33, %34 : vector<1x8x32xf32>
    %c0_19 = arith.constant 0 : index
    %c0_20 = arith.constant 0 : index
    %c0_21 = arith.constant 0 : index
    %36 = vector.load %arg3[%c0_19, %c0_20, %c0_21] : memref<1x8x32xf32, #tpu.memory_space<vmem>>, vector<1x8x32xf32>
    tpu.vector_store %arg3[%c0_19, %c0_20, %c0_21], %35 {strides = array<i32>} : memref<1x8x32xf32, #tpu.memory_space<vmem>>, vector<1x8x32xf32>,
    return
  }
  func.func @transform_0(%arg0: i32) -> (i32, i32, i32) {
    %c0_i32 = arith.constant 0 : i32
    %c0_i32_0 = arith.constant 0 : i32
    %c0_i32_1 = arith.constant 0 : i32
    return %arg0, %c0_i32, %c0_i32_0 : i32, i32, i32
  }
  func.func @transform_1(%arg0: i32) -> (i32, i32) {
    %c0_i32 = arith.constant 0 : i32
    %c0_i32_0 = arith.constant 0 : i32
    %c0_i32_1 = arith.constant 0 : i32
    return %c0_i32, %c0_i32_0 : i32, i32
  }
  func.func @transform_2(%arg0: i32) -> (i32, i32, i32) {
    %c0_i32 = arith.constant 0 : i32
    %c0_i32_0 = arith.constant 0 : i32
    %c0_i32_1 = arith.constant 0 : i32
    return %arg0, %c0_i32, %c0_i32_0 : i32, i32, i32
  }
}

</mosaic_0001>

<llo_original>
// kernel: tpu_custom_call.1
$region0: #{tpu_custom_call.1}
  #allocation0 [shape = 'u32[]', space=smem, size = 0x4, offset = 0x4, fixed_abs, tag = 'smem constant byte address 0x4 - core index']
  #allocation1 [shape = 'u32[144,128]{1,0:T(1,128)}', space=vmem, size = 0x12000, scoped, tag = 'internal scratch']
  %s0 = inlined_call_operand.hbm [shape: f32[2,8,32], index: 0, kind: input, shape index: {}]
  %s1 = inlined_call_operand.vmem [shape: f32[1,32], index: 1, kind: input, shape index: {}]
  %s2 = inlined_call_operand.hbm [shape: f32[2,8,32], index: 2, kind: output, shape index: {}]
  %s3 = sld [smem:[#allocation0]]
  $region45: #{tpu_custom_call.1} parent=0
    _
  %s5 = ssub.s32 1, %s3
  %s6 = scalar_select 0, %s5, %s3
  $region1: #{tpu_custom_call.1} parent=0
    #allocation2 [shape = 'u8[8192]{0}', space=vmem, size = 0x2000, scoped, tag = 'input window, operand 0']
    #allocation3 [shape = 's32[2]{0}', space=sflag, size = 0x8, scoped, tag = 'scoped memory for tpu_custom_call.1']
    #allocation4 [shape = 's32[2]{0}', space=sflag, size = 0x8, scoped, tag = 'scoped memory for tpu_custom_call.1']
    #allocation5 [shape = 'u8[8192]{0}', space=vmem, size = 0x2000, scoped, tag = 'output window, operand 0']
    %7 = vsyncpa [#allocation3], 0
    %s8 = scalar_lea.sflag [#allocation3], 1
    %9 = vsyncpa %s8, 0
    %10 = vsyncpa [#allocation4], 0
    %s11 = scalar_lea.sflag [#allocation4], 1
    %12 = vsyncpa %s11, 0
    loop: start=0, step=1, limit=4
    $region2: #{tpu_custom_call.1} parent=1 // loop_pre_header
      _
    $region3: #{tpu_custom_call.1} parent=1 // loop_header
      %s14 = sphi 0, %s18
      %p15 = scmp.ge.s32.totalorder %s14, 4
      %s24 = sphi 0, %s26
      %s27 = sphi 0, %s24
      %s28 = sphi 0, %s27
      %s44 = sphi 0, %s28
      %s48 = sphi 0, %s48
      %s50 = sphi 0, %s48
      %s51 = sphi 0, %s50
      %s65 = sphi 0, %s51
      %s71 = sphi 0, %s73
      %s74 = sphi 0, %s71
      %s75 = sphi 0, %s74
      %s91 = sphi 0, %s75
    $region4: #{tpu_custom_call.1} parent=1 // loop_header_branch
      %17 = sbr.rel (%p15) target = $region8
    $region5: #{tpu_custom_call.1} parent=1 // loop_body
      %s19 = ssub.s32 %s14, 1
      %s20 = ssub.s32 %s14, 2
      %s21 = sadd.s32 %s14, 1
      %s22 = ssub.s32 %s14, %s21
      %p23 = scmp.eq.s32.totalorder %s22, 0
      %s25 = sadd.s32 %s24, 1
      %s26 = scalar_select %p23, %s24, %s25
      %p29 = pneg %p23
      %p30 = scmp.eq.s32.totalorder %s14, 1
      %p31 = por %p29, %p30
      %p32 = scmp.ne.s32.totalorder %s24, %s27
      %p33 = scmp.eq.s32.totalorder %s14, 0
      %p34 = por %p32, %p33
      %p35 = scmp.ne.s32.totalorder %s24, %s27
      %p36 = scmp.eq.s32.totalorder %s19, 1
      %p37 = por %p35, %p36
      %p38 = scmp.ne.s32.totalorder %s27, %s28
      %p39 = scmp.eq.s32.totalorder %s19, 0
      %p40 = por %p38, %p39
      %p41 = scmp.ne.s32.totalorder %s27, %s28
      %p42 = scmp.eq.s32.totalorder %s20, 1
      %p43 = por %p41, %p42
      %p45 = scmp.ne.s32.totalorder %s28, %s44
      %p46 = scmp.eq.s32.totalorder %s20, 0
      %p47 = por %p45, %p46
      %s49 = sadd.s32 %s48, 1
      %p52 = scmp.eq.s32.totalorder %s14, 1
      %p53 = scmp.ne.s32.totalorder %s48, %s50
      %p54 = scmp.eq.s32.totalorder %s14, 0
      %p55 = por %p53, %p54
      %p56 = scmp.ne.s32.totalorder %s48, %s50
      %p57 = scmp.eq.s32.totalorder %s19, 1
      %p58 = por %p56, %p57
      %p59 = scmp.ne.s32.totalorder %s50, %s51
      %p60 = scmp.eq.s32.totalorder %s19, 0
      %p61 = por %p59, %p60
      %p62 = scmp.ne.s32.totalorder %s50, %s51
      %p63 = scmp.eq.s32.totalorder %s20, 1
      %p64 = por %p62, %p63
      %p66 = scmp.ne.s32.totalorder %s51, %s65
      %p67 = scmp.eq.s32.totalorder %s20, 0
      %p68 = por %p66, %p67
      %s69 = ssub.s32 %s14, %s21
      %p70 = scmp.eq.s32.totalorder %s69, 0
      %s72 = sadd.s32 %s71, 1
      %s73 = scalar_select %p70, %s71, %s72
      %p76 = pneg %p70
      %p77 = scmp.eq.s32.totalorder %s14, 1
      %p78 = por %p76, %p77
      %p79 = scmp.ne.s32.totalorder %s71, %s74
      %p80 = scmp.eq.s32.totalorder %s14, 0
      %p81 = por %p79, %p80
      %p82 = scmp.ne.s32.totalorder %s71, %s74
      %p83 = scmp.eq.s32.totalorder %s19, 1
      %p84 = por %p82, %p83
      %p85 = scmp.ne.s32.totalorder %s74, %s75
      %p86 = scmp.eq.s32.totalorder %s19, 0
      %p87 = por %p85, %p86
      %p88 = scmp.ne.s32.totalorder %s74, %s75
      %p89 = scmp.eq.s32.totalorder %s20, 1
      %p90 = por %p88, %p89
      %p92 = scmp.ne.s32.totalorder %s75, %s91
      %p93 = scmp.eq.s32.totalorder %s20, 0
      %p94 = por %p92, %p93
      %p95 = scmp.le.s32.totalorder 1, %s14
      %p96 = scmp.lt.s32.totalorder %s14, 3
      %p97 = pnand %p95, %p96
      %p98 = pneg %p97
      // Predicated region
      $region9: #{tpu_custom_call.1} parent=5 // pred_check
        _
      $region10: #{tpu_custom_call.1} parent=5 // pred_check_branch
        %100 = sbr.rel (%p97) target = $region12
      $region11: #{tpu_custom_call.1} parent=5 // pred_region
        %s101 = ssub.s32 %s14, 1
        // Predicated region
        $region13: #{tpu_custom_call.1} parent=11 // pred_check
          %p102 = pneg %p61
        $region14: #{tpu_custom_call.1} parent=11 // pred_check_branch
          %104 = sbr.rel (%p102) target = $region16
        $region15: #{tpu_custom_call.1} parent=11 // pred_region
          _
        $region16: #{tpu_custom_call.1} parent=11 // pred_fallthru
          _
      $region12: #{tpu_custom_call.1} parent=5 // pred_fallthru
        _
      %p105 = scmp.lt.s32.totalorder %s14, 2
      // Predicated region
      $region17: #{tpu_custom_call.1} parent=5 // pred_check
        %p106 = pneg %p105
      $region18: #{tpu_custom_call.1} parent=5 // pred_check_branch
        %108 = sbr.rel (%p106) target = $region20
      $region19: #{tpu_custom_call.1} parent=5 // pred_region
        // Predicated region
        $region21: #{tpu_custom_call.1} parent=19 // pred_check
          %p109 = pneg %p34
        $region22: #{tpu_custom_call.1} parent=19 // pred_check_branch
          %111 = sbr.rel (%p109) target = $region24
        $region23: #{tpu_custom_call.1} parent=19 // pred_region
          %s112 = sand.u32 %s24, 1
          %s113 = scalar_lea.sflag [#allocation3], %s112
          %s114 = sand.u32 %s24, 1
          %s115 = smul.addr %s114, 8
          %s116 = scalar_lea.vmem [#allocation2], %s115
          %s118 = ssub.s32 128, 128
          %119 = vsyncadd %s113, %s118
          %s120 = smul.addr %s14, 128
          %s121 = scalar_lea.hbm %s0, %s120
          %s123 = sshll.u32 %s116, 4
          %s124 = int_to_ptr.vmem [resolvable:$true] %s123
          %126 = dma.hbm_to_vmem [thread:$0]  %s121, 128, %s124, %s113
        $region24: #{tpu_custom_call.1} parent=19 // pred_fallthru
          _
      $region20: #{tpu_custom_call.1} parent=5 // pred_fallthru
        _
      %p127 = scmp.le.s32.totalorder 1, %s14
      %p128 = scmp.lt.s32.totalorder %s14, 3
      %p129 = pnand %p127, %p128
      %p130 = pneg %p129
      // Predicated region
      $region25: #{tpu_custom_call.1} parent=5 // pred_check
        _
      $region26: #{tpu_custom_call.1} parent=5 // pred_check_branch
        %132 = sbr.rel (%p129) target = $region28
      $region27: #{tpu_custom_call.1} parent=5 // pred_region
        %s133 = ssub.s32 %s14, 1
        %s134 = sand.u32 %s27, 1
        %s135 = scalar_lea.sflag [#allocation3], %s134
        %s136 = sand.u32 %s27, 1
        %s137 = smul.addr %s136, 8
        %s138 = scalar_lea.vmem [#allocation2], %s137
        // Predicated region
        $region29: #{tpu_custom_call.1} parent=27 // pred_check
          %p139 = pneg %p40
        $region30: #{tpu_custom_call.1} parent=27 // pred_check_branch
          %141 = sbr.rel (%p139) target = $region32
        $region31: #{tpu_custom_call.1} parent=27 // pred_region
          %142 = dma.done %s135, 128
        $region32: #{tpu_custom_call.1} parent=27 // pred_fallthru
          _
        %s143 = sand.u32 %s27, 1
        %s144 = scalar_lea.sflag [#allocation3], %s143
        %s145 = sand.u32 %s27, 1
        %s146 = smul.addr %s145, 8
        %s147 = scalar_lea.vmem [#allocation2], %s146
        %p148 = pneg %p40
        %p149 = pneg %p37
        %p150 = pneg %p61
        %p151 = pneg %p58
        %p152 = pneg %p87
        %p153 = pneg %p84
        %s154 = sand.u32 %s74, 1
        %s155 = scalar_lea.sflag [#allocation4], %s154
        %s156 = sand.u32 %s74, 1
        %s157 = smul.addr %s156, 8
        %s158 = scalar_lea.vmem [#allocation5], %s157
        %v159 = vld [vmem:[%s138] sm:$0xff]
        %vm160 = vcmask 261120
        %v161 = vsel %vm160, %v159, 0.0
        %162 = vadd.xlane.f32.xlu0 %v161
        %v163 = vpop.xlane.xlu0 %162
        %v164 = vmul.f32 %v163, 0.03125
        %v165 = vsub.f32 %v159, %v164
        %v166 = vmul.f32 %v165, %v165
        %v167 = vsel %vm160, %v166, 0.0
        %168 = vadd.xlane.f32.xlu0 %v167
        %v169 = vpop.xlane.xlu0 %168
        %v170 = vmul.f32 %v169, 0.03125
        %v171 = vadd.f32 %v170, 1e-05
        %v172 = vrsqrt.pop %v171
        %v173 = vmul.f32 %v165, %v172
        %v174 = vsel %vm160, %v173, 0.0
        %v175 = vrot.slane %v174, 4
        %v176 = vadd.f32 %v174, %v175
        %v177 = vrot.slane %v176, 2
        %v178 = vadd.f32 %v176, %v177
        %v179 = vrot.slane %v178, 1
        %v180 = vadd.f32 %v178, %v179
        %v181 = vrcp.pop 8.0
        %v182 = vmul.f32 %v180, %v181
        %v183 = vld [vmem:[%s1] sm:$0x1]
        %v184 = vsub.f32 %v173, %v182
        %v186 = vlaneseq
        %v187 = vshrl.u32 %v186, 7
        %v188 = vsub.s32 0, %v187
        %v189 = vrot.slane %v183, %v188
        %v191 = vmul.f32 %v184, %v189
        %192 = vst.msk [vmem:[%s158] sm:$0xff] %vm160, %v191
        %s193 = sand.u32 %s74, 1
        %s194 = scalar_lea.sflag [#allocation4], %s193
        %s195 = sand.u32 %s74, 1
        %s196 = smul.addr %s195, 8
        %s197 = scalar_lea.vmem [#allocation5], %s196
        // Predicated region
        $region33: #{tpu_custom_call.1} parent=27 // pred_check
          %p198 = pneg %p84
        $region34: #{tpu_custom_call.1} parent=27 // pred_check_branch
          %200 = sbr.rel (%p198) target = $region36
        $region35: #{tpu_custom_call.1} parent=27 // pred_region
          %s202 = ssub.s32 128, 128
          %203 = vsyncadd %s194, %s202
          %s204 = smul.addr %s19, 128
          %s205 = scalar_lea.hbm %s2, %s204
          %s207 = sshll.u32 %s197, 4
          %s208 = int_to_ptr.vmem [resolvable:$true] %s207
          %210 = dma.vmem_to_hbm [thread:$0]  %s208, 128, %s205, %s194
        $region36: #{tpu_custom_call.1} parent=27 // pred_fallthru
          _
      $region28: #{tpu_custom_call.1} parent=5 // pred_fallthru
        _
      %p211 = scmp.le.s32.totalorder 2, %s14
      // Predicated region
      $region37: #{tpu_custom_call.1} parent=5 // pred_check
        %p212 = pneg %p211
      $region38: #{tpu_custom_call.1} parent=5 // pred_check_branch
        %214 = sbr.rel (%p212) target = $region40
      $region39: #{tpu_custom_call.1} parent=5 // pred_region
        %s215 = ssub.s32 %s14, 2
        // Predicated region
        $region41: #{tpu_custom_call.1} parent=39 // pred_check
          %p216 = pneg %p90
        $region42: #{tpu_custom_call.1} parent=39 // pred_check_branch
          %218 = sbr.rel (%p216) target = $region44
        $region43: #{tpu_custom_call.1} parent=39 // pred_region
          %s219 = sand.u32 %s75, 1
          %s220 = scalar_lea.sflag [#allocation4], %s219
          %s221 = sand.u32 %s75, 1
          %s222 = smul.addr %s221, 8
          %s223 = scalar_lea.vmem [#allocation5], %s222
          %224 = dma.done %s220, 128
        $region44: #{tpu_custom_call.1} parent=39 // pred_fallthru
          _
      $region40: #{tpu_custom_call.1} parent=5 // pred_fallthru
        _
    $region6: #{tpu_custom_call.1} parent=1 // loop_footer
      %s18 = sadd.s32 1, %s14
    $region7: #{tpu_custom_call.1} parent=1 // loop_footer_branch
      %13 = sbr.rel target = $region3
    $region8: #{tpu_custom_call.1} parent=1 // loop_exit
      _
    %225 = vsyncpa [#allocation3], 1
    %s226 = scalar_lea.sflag [#allocation3], 1
    %227 = vsyncpa %s226, 1
    %228 = vsyncpa [#allocation4], 1
    %s229 = scalar_lea.sflag [#allocation4], 1
    %230 = vsyncpa %s229, 1

</llo_original>
